<compile_context>
chip_gen: v5e
topology: v5e:2x2
jax: 0.10.0
libtpu: 0.0.40
codegen_flags: <defaults>
</compile_context>

<pallas_src>
import math

import jax
import jax.numpy as jnp
from jax.experimental import pallas as pl
from jax.experimental.pallas import tpu as pltpu

LANE = 128   # TPU lane width (last dim of a vreg)
SUB = 8      # TPU sublane granularity (second-to-last dim, f32)


def _round_up(n, m):
    return ((n + m - 1) // m) * m


# ---------------------------------------------------------------------------
# Pallas kernel: fused MLP.  Layer-1 bias added explicitly (and it installs
# the carrier 1.0 in lane 127); all later biases ride the carrier lane and are
# folded into the matmuls.
# ---------------------------------------------------------------------------
def _make_mlp_kernel(n_inputs, n_layers, n_outputs):
    """Weight-slab layout per layer i:
         rows 0..fan_in-1 : W_i  (fan_in x fan_out, rest zero)
         row  127         : b_i  (plus, for non-final layers, 1.0 in lane 127
                                  -> the bias-carrier pass-through)
    """

    def kernel(x_ref, w_ref, o_ref):
        # ----- layer 1: Linear + bias (explicit add) -> Dropout(p=0) -> ReLU
        x = x_ref[...].astype(jnp.bfloat16)                 # (bt, n_inputs)
        w1 = w_ref[0, :n_inputs, :]                         # (n_inputs, 128) bf16
        b1 = w_ref[0, LANE - 1:LANE, :]                     # (1, 128); lane 127 == 1.0
        h = jnp.dot(x, w1, preferred_element_type=jnp.float32) + b1
        h = jnp.maximum(h, 0.0)      # lane 127 becomes the bias carrier (== 1.0)

        # ----- hidden layers 2..n-1: bias folded into the matmul via carrier
        for i in range(1, n_layers - 1):
            h = jnp.dot(h.astype(jnp.bfloat16), w_ref[i],
                        preferred_element_type=jnp.float32)
            h = jnp.maximum(h, 0.0)

        # ----- output layer: Linear (+bias via carrier), no activation.
        y = jnp.dot(h.astype(jnp.bfloat16), w_ref[n_layers - 1],
                    preferred_element_type=jnp.float32)
        o_ref[...] = y[:, :n_outputs]                       # narrow (masked) store

        # TODO(synk): Dropout with p_dropout > 0 in training mode would need
        # pltpu.prng_seed + pltpu.prng_random_bits masking; the module default
        # p=0 (and eval mode) is an exact identity, so it is omitted here.

    return kernel


# ---------------------------------------------------------------------------
# Host-side parameter packing: 2*n_layers arrays -> one (n_layers,128,128) slab
# ---------------------------------------------------------------------------
def pack_params(params, n_inputs, hidden_sizes, n_outputs, dtype=jnp.bfloat16):
    sizes = [n_inputs] + list(hidden_sizes) + [n_outputs]
    n_layers = len(sizes) - 1
    assert n_layers >= 2, "expects at least one hidden layer"
    assert max(sizes) <= LANE - 1, (
        "all layer widths must stay below lane 127 (the bias-carrier lane)")
    w_all = jnp.zeros((n_layers, LANE, LANE), jnp.float32)
    for i in range(n_layers):
        w, b = params[2 * i], params[2 * i + 1]        # w: [in, out], b: [out]
        fan_in, fan_out = sizes[i], sizes[i + 1]
        w_all = w_all.at[i, :fan_in, :fan_out].set(w)
        w_all = w_all.at[i, LANE - 1, :fan_out].set(b.reshape(-1))   # bias row
        if i < n_layers - 1:
            # 1.0 pass-through keeps the bias carrier alive for the next layer
            w_all = w_all.at[i, LANE - 1, LANE - 1].set(1.0)
    return w_all.astype(dtype)


# ---------------------------------------------------------------------------
# Batch-tile selection
# ---------------------------------------------------------------------------
def _choose_batch_tile(batch_pad):
    """Rows per grid step.  Large tiles amortize the ~0.35us/step pipeline
    overhead; for medium batches we still want >= 2 steps so the "parallel"
    grid axis can shard across both v7x TensorCores."""
    target = 1024
    if batch_pad >= 1024:
        return min(target, _round_up((batch_pad + 1) // 2, SUB))
    return batch_pad


# ---------------------------------------------------------------------------
# Forward wrapper
# ---------------------------------------------------------------------------
def agent_dqn_forward(x, w_all, n_outputs):
    batch, n_inputs = x.shape
    n_layers = w_all.shape[0]

    # Pad the batch only to the sublane granularity (8), never to the tile.
    batch_pad = max(_round_up(batch, SUB), SUB)
    if batch_pad != batch:
        x = jnp.pad(x, ((0, batch_pad - batch), (0, 0)))

    bt = _choose_batch_tile(batch_pad)
    grid = (pl.cdiv(batch_pad, bt),)

    flops = 2 * batch_pad * n_layers * LANE * LANE
    bytes_accessed = (x.size * x.dtype.itemsize
                      + w_all.size * w_all.dtype.itemsize
                      + batch_pad * n_outputs * 4)

    out = pl.pallas_call(
        _make_mlp_kernel(n_inputs, n_layers, n_outputs),
        out_shape=jax.ShapeDtypeStruct((batch_pad, n_outputs), jnp.float32),
        grid=grid,
        in_specs=[
            pl.BlockSpec((bt, n_inputs), lambda i: (i, 0)),
            # Constant index_map -> the weight slab is fetched once and reused
            # across all grid steps (grid-invariant input, no per-step re-DMA).
            pl.BlockSpec((n_layers, LANE, LANE), lambda i: (0, 0, 0)),
        ],
        out_specs=pl.BlockSpec((bt, n_outputs), lambda i: (i, 0)),
        compiler_params=pltpu.CompilerParams(
            dimension_semantics=("parallel",)),
        cost_estimate=pl.CostEstimate(
            flops=flops, transcendentals=0, bytes_accessed=bytes_accessed),
    )(x, w_all)

    return out[:batch]


# ---------------------------------------------------------------------------
# Deterministic parameter initialization (PyTorch-style uniform bounds)
# ---------------------------------------------------------------------------
def init_params(key, n_inputs, hidden_sizes, n_outputs):
    sizes = [n_inputs] + list(hidden_sizes) + [n_outputs]
    params = []
    for i in range(len(sizes) - 1):
        fan_in, fan_out = sizes[i], sizes[i + 1]
        bound = 1.0 / math.sqrt(fan_in)
        key, kw, kb = jax.random.split(key, 3)
        # stored as [in, out] (transposed vs. torch's [out, in]) -> x @ W
        w = jax.random.uniform(kw, (fan_in, fan_out), jnp.float32, -bound, bound)
        b = jax.random.uniform(kb, (fan_out,), jnp.float32, -bound, bound)
        params += [w, b]
    return tuple(params)


def reference_forward(x, params):
    n_layers = len(params) // 2
    h = x
    for i in range(n_layers - 1):
        h = jnp.maximum(h @ params[2 * i] + params[2 * i + 1], 0.0)
    return h @ params[-2] + params[-1]


if __name__ == "__main__":
    # AgentDQN(n_inputs=32, n_outputs=8,
    #          hidden_layers=[('linear', 32), ('linear', 32)])
    n_inputs, n_outputs = 32, 8
    hidden_sizes = [32, 32]

    key = jax.random.PRNGKey(0)
    key, kx = jax.random.split(key)
    params = init_params(key, n_inputs, hidden_sizes, n_outputs)
    w_all = pack_params(params, n_inputs, hidden_sizes, n_outputs)

    # Primary small-shape run (batch of 8 agent observations).
    x = jax.random.normal(kx, (8, n_inputs), jnp.float32)
    y = jax.block_until_ready(agent_dqn_forward(x, w_all, n_outputs))
    y_ref = reference_forward(x, params)
    assert y.shape == (8, n_outputs)
    # bf16 weights/activations (f32 accumulation) vs. the f32 reference.
    assert jnp.allclose(y, y_ref, atol=5e-2, rtol=5e-2), (
        "max abs err %f" % float(jnp.max(jnp.abs(y - y_ref))))

    # Second run with a batch that is not a multiple of 8 (exercises the
    # row-pad + row-slice path of the wrapper).
    key, kx2 = jax.random.split(key)
    x2 = jax.random.normal(kx2, (13, n_inputs), jnp.float32)
    y2 = jax.block_until_ready(agent_dqn_forward(x2, w_all, n_outputs))
    y2_ref = reference_forward(x2, params)
    assert y2.shape == (13, n_outputs)
    assert jnp.allclose(y2, y2_ref, atol=5e-2, rtol=5e-2), (
        "max abs err %f" % float(jnp.max(jnp.abs(y2 - y2_ref))))

    print("KERNEL_OK")
</pallas_src>

<mosaic_0001>
module attributes {stable_mosaic.version = 11 : i64} {
  func.func @kernel(%arg0: i32, %arg1: memref<8x32xf32, #tpu.memory_space<vmem>>, %arg2: memref<3x128x128xbf16, #tpu.memory_space<vmem>>, %arg3: memref<8x8xf32, #tpu.memory_space<vmem>>) attributes {dimension_semantics = [#tpu.dimension_semantics<parallel>], iteration_bounds = array<i64: 1>, scalar_prefetch = 0 : i64, scratch_operands = 0 : i64, tpu.core_type = #tpu.core_type<tc>, window_params = [{transform_indices = @transform_0, window_bounds = array<i64: 8, 32>}, {pipeline_mode = #tpu.pipeline_mode<synchronous>, transform_indices = @transform_1, window_bounds = array<i64: 3, 128, 128>}, {transform_indices = @transform_2, window_bounds = array<i64: 8, 8>}]} {
    %c0 = arith.constant 0 : index
    %c0_0 = arith.constant 0 : index
    %0 = vector.load %arg1[%c0, %c0_0] : memref<8x32xf32, #tpu.memory_space<vmem>>, vector<8x32xf32>
    %1 = arith.truncf %0 : vector<8x32xf32> to vector<8x32xbf16>
    %c0_1 = arith.constant 0 : index
    %c0_2 = arith.constant 0 : index
    %c0_3 = arith.constant 0 : index
    %2 = vector.load %arg2[%c0_1, %c0_2, %c0_3] : memref<3x128x128xbf16, #tpu.memory_space<vmem>>, vector<1x32x128xbf16>
    %3 = vector.shape_cast %2 : vector<1x32x128xbf16> to vector<32x128xbf16>
    %c0_4 = arith.constant 0 : index
    %c127 = arith.constant 127 : index
    %c0_5 = arith.constant 0 : index
    %4 = vector.load %arg2[%c0_4, %c127, %c0_5] : memref<3x128x128xbf16, #tpu.memory_space<vmem>>, vector<1x1x128xbf16>
    %5 = vector.shape_cast %4 : vector<1x1x128xbf16> to vector<1x128xbf16>
    %cst = arith.constant dense<0.000000e+00> : vector<8x128xf32>
    %6 = tpu.matmul %1, %3, %cst {dimension_numbers = #tpu.dot_dimension_numbers<[1], [0], [0], [1], [0, 0, 1, 1], [], []>} : vector<8x32xbf16>, vector<32x128xbf16>, vector<8x128xf32> -> vector<8x128xf32>
    %7 = arith.extf %5 : vector<1x128xbf16> to vector<1x128xf32>
    %8 = vector.broadcast %7 : vector<1x128xf32> to vector<8x128xf32>
    %9 = arith.addf %6, %8 : vector<8x128xf32>
    %cst_6 = arith.constant 0.000000e+00 : f32
    %10 = vector.broadcast %cst_6 : f32 to vector<8x128xf32>
    %11 = arith.maximumf %9, %10 : vector<8x128xf32>
    %12 = arith.truncf %11 : vector<8x128xf32> to vector<8x128xbf16>
    %c1 = arith.constant 1 : index
    %c0_7 = arith.constant 0 : index
    %c0_8 = arith.constant 0 : index
    %13 = vector.load %arg2[%c1, %c0_7, %c0_8] : memref<3x128x128xbf16, #tpu.memory_space<vmem>>, vector<1x128x128xbf16>
    %14 = vector.shape_cast %13 : vector<1x128x128xbf16> to vector<128x128xbf16>
    %cst_9 = arith.constant dense<0.000000e+00> : vector<8x128xf32>
    %15 = tpu.matmul %12, %14, %cst_9 {dimension_numbers = #tpu.dot_dimension_numbers<[1], [0], [0], [1], [0, 0, 1, 1], [], []>} : vector<8x128xbf16>, vector<128x128xbf16>, vector<8x128xf32> -> vector<8x128xf32>
    %cst_10 = arith.constant 0.000000e+00 : f32
    %16 = vector.broadcast %cst_10 : f32 to vector<8x128xf32>
    %17 = arith.maximumf %15, %16 : vector<8x128xf32>
    %18 = arith.truncf %17 : vector<8x128xf32> to vector<8x128xbf16>
    %c2 = arith.constant 2 : index
    %c0_11 = arith.constant 0 : index
    %c0_12 = arith.constant 0 : index
    %19 = vector.load %arg2[%c2, %c0_11, %c0_12] : memref<3x128x128xbf16, #tpu.memory_space<vmem>>, vector<1x128x128xbf16>
    %20 = vector.shape_cast %19 : vector<1x128x128xbf16> to vector<128x128xbf16>
    %cst_13 = arith.constant dense<0.000000e+00> : vector<8x128xf32>
    %21 = tpu.matmul %18, %20, %cst_13 {dimension_numbers = #tpu.dot_dimension_numbers<[1], [0], [0], [1], [0, 0, 1, 1], [], []>} : vector<8x128xbf16>, vector<128x128xbf16>, vector<8x128xf32> -> vector<8x128xf32>
    %22 = vector.extract_strided_slice %21 {offsets = [0, 0], sizes = [8, 8], strides = [1, 1]} : vector<8x128xf32> to vector<8x8xf32>
    %c0_14 = arith.constant 0 : index
    %c0_15 = arith.constant 0 : index
    %23 = vector.load %arg3[%c0_14, %c0_15] : memref<8x8xf32, #tpu.memory_space<vmem>>, vector<8x8xf32>
    tpu.vector_store %arg3[%c0_14, %c0_15], %22 {strides = array<i32>} : memref<8x8xf32, #tpu.memory_space<vmem>>, vector<8x8xf32>,
    return
  }
  func.func @transform_0(%arg0: i32) -> (i32, i32) {
    %c0_i32 = arith.constant 0 : i32
    %c0_i32_0 = arith.constant 0 : i32
    return %arg0, %c0_i32 : i32, i32
  }
  func.func @transform_1(%arg0: i32) -> (i32, i32, i32) {
    %c0_i32 = arith.constant 0 : i32
    %c0_i32_0 = arith.constant 0 : i32
    %c0_i32_1 = arith.constant 0 : i32
    %c0_i32_2 = arith.constant 0 : i32
    return %c0_i32, %c0_i32_0, %c0_i32_1 : i32, i32, i32
  }
  func.func @transform_2(%arg0: i32) -> (i32, i32) {
    %c0_i32 = arith.constant 0 : i32
    %c0_i32_0 = arith.constant 0 : i32
    return %arg0, %c0_i32 : i32, i32
  }
}

</mosaic_0001>

<llo_original>
// kernel: tpu_custom_call.1
$region0: #{tpu_custom_call.1}
  #allocation0 [shape = 'u32[]', space=smem, size = 0x4, offset = 0x4, fixed_abs, tag = 'smem constant byte address 0x4 - core index']
  #allocation1 [shape = 'u32[72,128]{1,0:T(1,128)}', space=vmem, size = 0x9000, scoped, tag = 'internal scratch']
  %s0 = inlined_call_operand.hbm [shape: f32[8,32], index: 0, kind: input, shape index: {}]
  %s1 = inlined_call_operand.hbm [shape: bf16[3,128,128], index: 1, kind: input, shape index: {}]
  %s2 = inlined_call_operand.hbm [shape: f32[8,8], index: 2, kind: output, shape index: {}]
  %s3 = sld [smem:[#allocation0]]
  $region26: #{tpu_custom_call.1} parent=0
    _
  %s5 = ssub.s32 1, %s3
  %s6 = scalar_select 0, %s5, %s3
  $region1: #{tpu_custom_call.1} parent=0
    #allocation2 [shape = 'u8[4096]{0}', space=vmem, size = 0x1000, scoped, tag = 'input window, operand 0, single buffered']
    #allocation3 [shape = 's32[1]{0}', space=sflag, size = 0x4, scoped, tag = 'scoped memory for tpu_custom_call.1']
    #allocation4 [shape = 's32[1]{0}', space=sflag, size = 0x4, scoped, tag = 'scoped memory for tpu_custom_call.1']
    #allocation5 [shape = 'u8[98304]{0}', space=vmem, size = 0x18000, scoped, tag = 'input window, operand 1, single buffered']
    #allocation6 [shape = 's32[1]{0}', space=sflag, size = 0x4, scoped, tag = 'scoped memory for tpu_custom_call.1']
    #allocation7 [shape = 'u8[4096]{0}', space=vmem, size = 0x1000, scoped, tag = 'output window, operand 0, single buffered']
    %7 = vsyncpa [#allocation3], 0
    %8 = vsyncpa [#allocation6], 0
    %9 = vsyncpa [#allocation4], 0
    // Predicated region
    $region2: #{tpu_custom_call.1} parent=1 // pred_check
      _
    $region3: #{tpu_custom_call.1} parent=1 // pred_check_branch
      %11 = sbr.rel (0) target = $region5
    $region4: #{tpu_custom_call.1} parent=1 // pred_region
      %13 = vsyncadd [#allocation3], 0
      %s15 = sshll.u32 %s0, 4
      %s16 = int_to_ptr.hbm [resolvable:$true] %s15
      %s17 = sshll.u32 [#allocation2], 4
      %s18 = int_to_ptr.vmem [resolvable:$true] %s17
      %20 = dma.hbm_to_vmem [thread:$0]  %s16, 128, %s18, [#allocation3]
    $region5: #{tpu_custom_call.1} parent=1 // pred_fallthru
      _
    // Predicated region
    $region6: #{tpu_custom_call.1} parent=1 // pred_check
      _
    $region7: #{tpu_custom_call.1} parent=1 // pred_check_branch
      %22 = sbr.rel (0) target = $region9
    $region8: #{tpu_custom_call.1} parent=1 // pred_region
      %24 = vsyncadd [#allocation6], 0
      %s25 = sshll.u32 %s1, 4
      %s26 = int_to_ptr.hbm [resolvable:$true] %s25
      %s27 = sshll.u32 [#allocation5], 4
      %s28 = int_to_ptr.vmem [resolvable:$true] %s27
      %33 = dma.hbm_to_vmem [thread:$0]  %s26, 3072, %s28, [#allocation6], 64, 64, 4
    $region9: #{tpu_custom_call.1} parent=1 // pred_fallthru
      _
    // Predicated region
    $region10: #{tpu_custom_call.1} parent=1 // pred_check
      _
    $region11: #{tpu_custom_call.1} parent=1 // pred_check_branch
      %35 = sbr.rel (0) target = $region13
    $region12: #{tpu_custom_call.1} parent=1 // pred_region
      %37 = dma.done [#allocation3], 128
    $region13: #{tpu_custom_call.1} parent=1 // pred_fallthru
      _
    // Predicated region
    $region14: #{tpu_custom_call.1} parent=1 // pred_check
      _
    $region15: #{tpu_custom_call.1} parent=1 // pred_check_branch
      %39 = sbr.rel (0) target = $region17
    $region16: #{tpu_custom_call.1} parent=1 // pred_region
      %41 = dma.done [#allocation6], 3072
    $region17: #{tpu_custom_call.1} parent=1 // pred_fallthru
      _
    %v43 = vld [vmem:[#allocation2] sm:$0xff]
    %v44 = vpack.c.bf16 %v43, %v43
    %v45 = vld [vmem:[#allocation5] sm:$0xf]
    %v46 = vld [vmem:[#allocation5 + $0x4] sm:$0xf]
    %v47 = vld [vmem:[#allocation5 + $0x8] sm:$0xf]
    %v48 = vld [vmem:[#allocation5 + $0xc] sm:$0xf]
    %v49 = vld [vmem:[#allocation5 + $0x3c] sm:$0x8]
    %v50 = vunpack.c.l.bf16 %v49
    %v51 = vperm.slane %v50, 7
    %v56 = vunpack.c.l.b16 %v45
    %v57 = vunpack.c.l.b16 %v46
    %v58 = vunpack.c.l.b16 %v47
    %v59 = vunpack.c.l.b16 %v48
    %v60 = vpack.c.b16 %v57, %v56
    %v61 = vpack.c.b16 %v59, %v58
    %vm64 = vcmask 261120
    %v66 = vsel %vm64, %v44, 0
    %68 = vmatpush.bf16.msra.mxu0 0
    %69 = vmatpush.bf16.msra.mxu0 0
    %70 = vmatpush.bf16.msra.mxu0 0
    %71 = vmatpush.bf16.msra.mxu0 0
    %72 = vmatpush.bf16.msra.mxu0 0
    %73 = vmatpush.bf16.msra.mxu0 0
    %74 = vmatpush.bf16.msra.mxu0 %v61
    %75 = vmatpush.bf16.msra.mxu0 %v60
    %76 = vmatmul.bf16.gmra.mxu0 %v66
    %v77 = vpop.f32.mrf.mxu0
    %v78 = vadd.f32 %v51, %v77
    %v79 = vpop.f32.mrf.mxu0
    %80 = vdwg.mxu0
    %v81 = vmax.f32 %v78, 0.0
    %v82 = vpack.c.bf16 %v81, %v81
    %s83 = scalar_lea.vmem [#allocation5], 64
    %v84 = vld [vmem:[%s83] sm:$0xf]
    %v85 = vld [vmem:[%s83 + $0x4] sm:$0xf]
    %v86 = vld [vmem:[%s83 + $0x8] sm:$0xf]
    %v87 = vld [vmem:[%s83 + $0xc] sm:$0xf]
    %v88 = vld [vmem:[%s83 + $0x10] sm:$0xf]
    %v89 = vld [vmem:[%s83 + $0x14] sm:$0xf]
    %v90 = vld [vmem:[%s83 + $0x18] sm:$0xf]
    %v91 = vld [vmem:[%s83 + $0x1c] sm:$0xf]
    %v92 = vld [vmem:[%s83 + $0x20] sm:$0xf]
    %v93 = vld [vmem:[%s83 + $0x24] sm:$0xf]
    %v94 = vld [vmem:[%s83 + $0x28] sm:$0xf]
    %v95 = vld [vmem:[%s83 + $0x2c] sm:$0xf]
    %v96 = vld [vmem:[%s83 + $0x30] sm:$0xf]
    %v97 = vld [vmem:[%s83 + $0x34] sm:$0xf]
    %v98 = vld [vmem:[%s83 + $0x38] sm:$0xf]
    %v99 = vld [vmem:[%s83 + $0x3c] sm:$0xf]
    %v116 = vunpack.c.l.b16 %v84
    %v117 = vunpack.c.l.b16 %v85
    %v118 = vunpack.c.l.b16 %v86
    %v119 = vunpack.c.l.b16 %v87
    %v120 = vunpack.c.l.b16 %v88
    %v121 = vunpack.c.l.b16 %v89
    %v122 = vunpack.c.l.b16 %v90
    %v123 = vunpack.c.l.b16 %v91
    %v124 = vunpack.c.l.b16 %v92
    %v125 = vunpack.c.l.b16 %v93
    %v126 = vunpack.c.l.b16 %v94
    %v127 = vunpack.c.l.b16 %v95
    %v128 = vunpack.c.l.b16 %v96
    %v129 = vunpack.c.l.b16 %v97
    %v130 = vunpack.c.l.b16 %v98
    %v131 = vunpack.c.l.b16 %v99
    %v132 = vpack.c.b16 %v117, %v116
    %v133 = vpack.c.b16 %v119, %v118
    %v134 = vpack.c.b16 %v121, %v120
    %v135 = vpack.c.b16 %v123, %v122
    %v136 = vpack.c.b16 %v125, %v124
    %v137 = vpack.c.b16 %v127, %v126
    %v138 = vpack.c.b16 %v129, %v128
    %v139 = vpack.c.b16 %v131, %v130
    %148 = vmatpush.bf16.msra.mxu0 %v139
    %149 = vmatpush.bf16.msra.mxu0 %v138
    %150 = vmatpush.bf16.msra.mxu0 %v137
    %151 = vmatpush.bf16.msra.mxu0 %v136
    %152 = vmatpush.bf16.msra.mxu0 %v135
    %153 = vmatpush.bf16.msra.mxu0 %v134
    %154 = vmatpush.bf16.msra.mxu0 %v133
    %155 = vmatpush.bf16.msra.mxu0 %v132
    %156 = vmatmul.bf16.gmra.mxu0 %v82
    %v157 = vpop.f32.mrf.mxu0
    %v158 = vadd.f32 0.0, %v157
    %v159 = vpop.f32.mrf.mxu0
    %160 = vdwg.mxu0
    %v161 = vmax.f32 %v158, 0.0
    %v162 = vpack.c.bf16 %v161, %v161
    %s163 = scalar_lea.vmem [#allocation5], 128
    %v164 = vld [vmem:[%s163] sm:$0xf]
    %v165 = vld [vmem:[%s163 + $0x4] sm:$0xf]
    %v166 = vld [vmem:[%s163 + $0x8] sm:$0xf]
    %v167 = vld [vmem:[%s163 + $0xc] sm:$0xf]
    %v168 = vld [vmem:[%s163 + $0x10] sm:$0xf]
    %v169 = vld [vmem:[%s163 + $0x14] sm:$0xf]
    %v170 = vld [vmem:[%s163 + $0x18] sm:$0xf]
    %v171 = vld [vmem:[%s163 + $0x1c] sm:$0xf]
    %v172 = vld [vmem:[%s163 + $0x20] sm:$0xf]
    %v173 = vld [vmem:[%s163 + $0x24] sm:$0xf]
    %v174 = vld [vmem:[%s163 + $0x28] sm:$0xf]
    %v175 = vld [vmem:[%s163 + $0x2c] sm:$0xf]
    %v176 = vld [vmem:[%s163 + $0x30] sm:$0xf]
    %v177 = vld [vmem:[%s163 + $0x34] sm:$0xf]
    %v178 = vld [vmem:[%s163 + $0x38] sm:$0xf]
    %v179 = vld [vmem:[%s163 + $0x3c] sm:$0xf]
    %v196 = vunpack.c.l.b16 %v164
    %v197 = vunpack.c.l.b16 %v165
    %v198 = vunpack.c.l.b16 %v166
    %v199 = vunpack.c.l.b16 %v167
    %v200 = vunpack.c.l.b16 %v168
    %v201 = vunpack.c.l.b16 %v169
    %v202 = vunpack.c.l.b16 %v170
    %v203 = vunpack.c.l.b16 %v171
    %v204 = vunpack.c.l.b16 %v172
    %v205 = vunpack.c.l.b16 %v173
    %v206 = vunpack.c.l.b16 %v174
    %v207 = vunpack.c.l.b16 %v175
    %v208 = vunpack.c.l.b16 %v176
    %v209 = vunpack.c.l.b16 %v177
    %v210 = vunpack.c.l.b16 %v178
    %v211 = vunpack.c.l.b16 %v179
    %v212 = vpack.c.b16 %v197, %v196
    %v213 = vpack.c.b16 %v199, %v198
    %v214 = vpack.c.b16 %v201, %v200
    %v215 = vpack.c.b16 %v203, %v202
    %v216 = vpack.c.b16 %v205, %v204
    %v217 = vpack.c.b16 %v207, %v206
    %v218 = vpack.c.b16 %v209, %v208
    %v219 = vpack.c.b16 %v211, %v210
    %228 = vmatpush.bf16.msra.mxu0 %v219
    %229 = vmatpush.bf16.msra.mxu0 %v218
    %230 = vmatpush.bf16.msra.mxu0 %v217
    %231 = vmatpush.bf16.msra.mxu0 %v216
    %232 = vmatpush.bf16.msra.mxu0 %v215
    %233 = vmatpush.bf16.msra.mxu0 %v214
    %234 = vmatpush.bf16.msra.mxu0 %v213
    %235 = vmatpush.bf16.msra.mxu0 %v212
    %236 = vmatmul.bf16.gmra.mxu0 %v162
    %v237 = vpop.f32.mrf.mxu0
    %v238 = vadd.f32 0.0, %v237
    %v239 = vpop.f32.mrf.mxu0
    %240 = vdwg.mxu0
    %vm241 = vcmask 64512
    %242 = vst.msk [vmem:[#allocation7] sm:$0xff] %vm241, %v238
    // Predicated region
    $region18: #{tpu_custom_call.1} parent=1 // pred_check
      _
    $region19: #{tpu_custom_call.1} parent=1 // pred_check_branch
      %244 = sbr.rel (0) target = $region21
    $region20: #{tpu_custom_call.1} parent=1 // pred_region
      %246 = vsyncadd [#allocation4], 0
      %s248 = sshll.u32 [#allocation7], 4
      %s249 = int_to_ptr.vmem [resolvable:$true] %s248
      %s250 = sshll.u32 %s2, 4
      %s251 = int_to_ptr.hbm [resolvable:$true] %s250
      %253 = dma.vmem_to_hbm [thread:$0]  %s249, 128, %s251, [#allocation4]
    $region21: #{tpu_custom_call.1} parent=1 // pred_fallthru
      _
    // Predicated region
    $region22: #{tpu_custom_call.1} parent=1 // pred_check
      _
    $region23: #{tpu_custom_call.1} parent=1 // pred_check_branch
      %255 = sbr.rel (0) target = $region25
    $region24: #{tpu_custom_call.1} parent=1 // pred_region
      %257 = dma.done [#allocation4], 128
    $region25: #{tpu_custom_call.1} parent=1 // pred_fallthru
      _
    %258 = vsyncpa [#allocation3], 1
    %259 = vsyncpa [#allocation6], 1
    %260 = vsyncpa [#allocation4], 1

</llo_original>
